<compile_context>
chip_gen: v6e
topology: v6e:2x2x1
jax: 0.10.0
libtpu: 0.0.40
codegen_flags: <defaults>
</compile_context>

<pallas_src>
import functools

import jax
import jax.numpy as jnp
from jax.experimental import pallas as pl
from jax.experimental.pallas import tpu as pltpu


def _round_up(x: int, m: int) -> int:
    return (x + m - 1) // m * m


def _temp_gen_kernel(x1_ref, x2_ref, w1_ref, b1_ref, w2_ref, b2_ref, out_ref,
                     *, tau_min: float, tau_max: float):
    """One batch tile: tau = 0.5 * (branch(x1) + branch(x2)), batch on lanes.

    x1_ref, x2_ref : (TB, D)  input features
    w1_ref         : (M, D)   first Linear weight (native PyTorch layout)
    b1_ref         : (M, 1)   first Linear bias (column)
    w2_ref         : (M, 1)   second Linear weight as a column (W2[0, :]^T)
    b2_ref         : (1, 1)   second Linear bias, scalar in SMEM
    out_ref        : (1, TB)  lane-dense tau row for this tile
    """
    scale = tau_max - tau_min

    w1 = w1_ref[...]          # (M, D)
    b1 = b1_ref[...]          # (M, 1) -> broadcasts over lanes
    w2 = w2_ref[...]          # (M, 1) -> broadcasts over lanes
    b2 = b2_ref[0, 0]         # scalar (SMEM)

    def branch(x):
        # Layer 1 in the transposed domain: h = sigmoid(W1 @ x^T + b1) -> (M, TB).
        # dot_general contracts the last dim of both operands (q @ k^T pattern),
        # so no transpose is materialised and the batch lands on the lane axis.
        h = jax.lax.dot_general(
            w1, x,
            dimension_numbers=(((1,), (1,)), ((), ())),
            preferred_element_type=jnp.float32)
        h = jax.nn.sigmoid(h + b1)
        # Layer 2: a 1-output-row K=M matmul is wasteful on the MXU; do a VPU
        # multiply by the weight column + cross-sublane (XLU) reduce instead.
        y = jnp.sum(h * w2, axis=0, keepdims=True) + b2        # (1, TB)
        return scale * jax.nn.sigmoid(y) + tau_min

    t1 = branch(x1_ref[...])
    t2 = branch(x2_ref[...])
    out_ref[...] = (0.5 * (t1 + t2)).astype(out_ref.dtype)


def _vmem_budget_bytes() -> int:
    """Generation-aware scoped-VMEM budget (~60% of physical per-core VMEM)."""
    try:
        phys = int(pltpu.get_tpu_info().vmem_capacity_bytes)
    except Exception:  # conservative fallback (v7x has the smallest VMEM)
        phys = 64 * 1024 * 1024
    return min(int(0.6 * phys), 96 * 1024 * 1024)


def _pick_tile_b(B: int, D: int, itemsize: int, vmem_budget: int,
                 *, max_tile: int = 8192) -> int:
    """Largest batch tile within a padding-aware VMEM budget.

    Padded footprint per batch row: x1 + x2 tiles, double-buffered, with D
    rounded up to 128 lanes, plus the lane slot's activations and output.
    """
    d_pad = _round_up(D, 128)
    bytes_per_row = (2 * 2 * d_pad * itemsize      # x1, x2 double-buffered
                     + 8 * 8 * 4                   # (M->8, TB) f32 activations/temps
                     + 2 * 8 * 4)                  # (1->8, TB) output, double-buffered
    cap = max(128, (3 * vmem_budget // 4) // bytes_per_row)
    cap = min(cap, max_tile)
    if B >= 2 * 128:
        # Keep at least 2 grid steps so v7x's two TensorCores can both work.
        cap = min(cap, _round_up(pl.cdiv(B, 2), 128))
    if B <= cap:
        return B                                   # one grid step; block == full array
    return (cap // 128) * 128                      # lane/vreg-aligned multi-step tile


def temp_generator_forward(x1, x2, w1, b1, w2, b2,
                           tau_min=0.05, tau_max=0.7, tile_b=None):
    """Pallas implementation of TempGenerator.forward.

    x1, x2 : [B, D] float32 (bfloat16 also accepted; halves streamed bytes)
    w1     : [M, D] (PyTorch nn.Linear weight layout), b1 : [M]
    w2     : [1, M], b2 : [1]
    returns tau : [B] float32
    """
    B, D = x1.shape
    M = w1.shape[0]
    assert x2.shape == (B, D)
    x_dtype = x1.dtype
    itemsize = jnp.dtype(x_dtype).itemsize

    vmem_budget = _vmem_budget_bytes()
    if tile_b is None:
        tile_b = _pick_tile_b(B, D, itemsize, vmem_budget)
    tile_b = int(tile_b)

    grid_b = pl.cdiv(B, tile_b)
    B_pad = grid_b * tile_b
    if B_pad != B:
        pad = B_pad - B
        x1 = jnp.pad(x1, ((0, pad), (0, 0)))
        x2 = jnp.pad(x2, ((0, pad), (0, 0)))
    x2 = x2.astype(x_dtype)

    # Parameters in kernel layout.
    w1_k = jnp.asarray(w1).astype(x_dtype).reshape(M, D)   # match x dtype for MXU
    b1_k = jnp.asarray(b1, jnp.float32).reshape(M, 1)
    w2_k = jnp.asarray(w2, jnp.float32).reshape(M, 1)      # W2 row as a column
    b2_k = jnp.asarray(b2, jnp.float32).reshape(1, 1)

    # Padding-aware VMEM estimate (D rounded up to 128 lanes in VMEM).
    d_pad = _round_up(D, 128)
    est = 2 * 2 * tile_b * d_pad * itemsize       # x1/x2, double-buffered
    est += 8 * 8 * tile_b * 4                     # (M->8, TB) activations + temps
    est += 2 * 8 * tile_b * 4                     # (1->8, TB) output, double-buffered
    est += 2 * (8 * d_pad + 2 * 8 * 128) * 4      # W1, b1, w2 parameter blocks
    vmem_limit = int(min(max(est + est // 2, 32 * 1024 * 1024), vmem_budget))

    kernel = functools.partial(_temp_gen_kernel, tau_min=float(tau_min),
                               tau_max=float(tau_max))

    out = pl.pallas_call(
        kernel,
        out_shape=jax.ShapeDtypeStruct((1, B_pad), jnp.float32),
        grid_spec=pltpu.PrefetchScalarGridSpec(
            num_scalar_prefetch=0,
            grid=(grid_b,),
            in_specs=[
                pl.BlockSpec((tile_b, D), lambda i: (i, 0)),        # x1 tile
                pl.BlockSpec((tile_b, D), lambda i: (i, 0)),        # x2 tile
                pl.BlockSpec((M, D), lambda i: (0, 0)),             # W1 (grid-invariant)
                pl.BlockSpec((M, 1), lambda i: (0, 0)),             # b1 column
                pl.BlockSpec((M, 1), lambda i: (0, 0)),             # W2 column
                pl.BlockSpec(memory_space=pltpu.MemorySpace.SMEM),  # b2 scalar
            ],
            # Single lane-dense output row: each step writes a disjoint
            # (1, tile_b) lane window -> unmasked vector stores.
            out_specs=pl.BlockSpec((1, tile_b), lambda i: (0, i)),
        ),
        compiler_params=pltpu.CompilerParams(
            dimension_semantics=("parallel",),    # megacore sharding on v7x
            vmem_limit_bytes=vmem_limit),
    )(x1, x2, w1_k, b1_k, w2_k, b2_k)

    return out[0, :B]


def _reference_forward(x1, x2, w1, b1, w2, b2, tau_min=0.05, tau_max=0.7):
    def branch(x):
        h = jax.nn.sigmoid(x @ w1.T + b1)
        y = h @ w2.T + b2
        return (tau_max - tau_min) * jax.nn.sigmoid(y) + tau_min
    t1 = branch(x1).squeeze()
    t2 = branch(x2).squeeze()
    return (t1 + t2) / 2.0


if __name__ == "__main__":
    tau_min, tau_max = 0.05, 0.7
    D, M = 32, 8

    key = jax.random.PRNGKey(0)
    ks = jax.random.split(key, 8)

    # Parameters with nn.Linear(D, M) / nn.Linear(M, 1) shapes.
    w1 = jax.random.normal(ks[2], (M, D), dtype=jnp.float32) * 0.1
    b1 = jax.random.normal(ks[3], (M,), dtype=jnp.float32) * 0.1
    w2 = jax.random.normal(ks[4], (1, M), dtype=jnp.float32) * 0.1
    b2 = jax.random.normal(ks[5], (1,), dtype=jnp.float32) * 0.1

    # Case 1: small batch, single grid step (block == full array).
    B = 16
    x1 = jax.random.normal(ks[0], (B, D), dtype=jnp.float32)
    x2 = jax.random.normal(ks[1], (B, D), dtype=jnp.float32)
    tau = jax.block_until_ready(
        temp_generator_forward(x1, x2, w1, b1, w2, b2, tau_min, tau_max))
    tau_ref = _reference_forward(x1, x2, w1, b1, w2, b2, tau_min, tau_max)
    assert tau.shape == (B,)
    assert jnp.allclose(tau, tau_ref, atol=1e-5, rtol=1e-5)

    # Case 2: multi-step grid with batch padding (exercises the (1, tile_b)
    # lane-window output blocks, the padded tail, and the parallel batch axis).
    B2 = 300
    x1b = jax.random.normal(ks[6], (B2, D), dtype=jnp.float32)
    x2b = jax.random.normal(ks[7], (B2, D), dtype=jnp.float32)
    tau2 = jax.block_until_ready(
        temp_generator_forward(x1b, x2b, w1, b1, w2, b2, tau_min, tau_max,
                               tile_b=128))
    tau2_ref = _reference_forward(x1b, x2b, w1, b1, w2, b2, tau_min, tau_max)
    assert tau2.shape == (B2,)
    assert jnp.allclose(tau2, tau2_ref, atol=1e-5, rtol=1e-5)

    print("KERNEL_OK")
</pallas_src>

<mosaic_0001>
module attributes {stable_mosaic.version = 11 : i64} {
  func.func @_temp_gen_kernel(%arg0: i32, %arg1: memref<16x32xf32, #tpu.memory_space<vmem>>, %arg2: memref<16x32xf32, #tpu.memory_space<vmem>>, %arg3: memref<8x32xf32, #tpu.memory_space<vmem>>, %arg4: memref<8x1xf32, #tpu.memory_space<vmem>>, %arg5: memref<8x1xf32, #tpu.memory_space<vmem>>, %arg6: memref<1x1xf32, #tpu.memory_space<smem>>, %arg7: memref<1x16xf32, #tpu.memory_space<vmem>>) attributes {dimension_semantics = [#tpu.dimension_semantics<parallel>], iteration_bounds = array<i64: 1>, scalar_prefetch = 0 : i64, scratch_operands = 0 : i64, tpu.core_type = #tpu.core_type<tc>, window_params = [{transform_indices = @transform_0, window_bounds = array<i64: 16, 32>}, {transform_indices = @transform_1, window_bounds = array<i64: 16, 32>}, {pipeline_mode = #tpu.pipeline_mode<synchronous>, transform_indices = @transform_2, window_bounds = array<i64: 8, 32>}, {pipeline_mode = #tpu.pipeline_mode<synchronous>, transform_indices = @transform_3, window_bounds = array<i64: 8, 1>}, {pipeline_mode = #tpu.pipeline_mode<synchronous>, transform_indices = @transform_4, window_bounds = array<i64: 8, 1>}, {transform_indices = @transform_5, window_bounds = array<i64: 1, 1>}, {transform_indices = @transform_6, window_bounds = array<i64: 1, 16>}]} {
    %c0 = arith.constant 0 : index
    %c0_0 = arith.constant 0 : index
    %0 = vector.load %arg3[%c0, %c0_0] : memref<8x32xf32, #tpu.memory_space<vmem>>, vector<8x32xf32>
    %c0_1 = arith.constant 0 : index
    %c0_2 = arith.constant 0 : index
    %1 = vector.load %arg4[%c0_1, %c0_2] : memref<8x1xf32, #tpu.memory_space<vmem>>, vector<8x1xf32>
    %c0_3 = arith.constant 0 : index
    %c0_4 = arith.constant 0 : index
    %2 = vector.load %arg5[%c0_3, %c0_4] : memref<8x1xf32, #tpu.memory_space<vmem>>, vector<8x1xf32>
    %c0_5 = arith.constant 0 : index
    %c0_6 = arith.constant 0 : index
    %3 = memref.load %arg6[%c0_5, %c0_6] : memref<1x1xf32, #tpu.memory_space<smem>>
    %c0_7 = arith.constant 0 : index
    %c0_8 = arith.constant 0 : index
    %4 = vector.load %arg1[%c0_7, %c0_8] : memref<16x32xf32, #tpu.memory_space<vmem>>, vector<16x32xf32>
    %cst = arith.constant dense<0.000000e+00> : vector<8x16xf32>
    %5 = tpu.matmul %0, %4, %cst {dimension_numbers = #tpu.dot_dimension_numbers<[1], [1], [0], [0], [0, 0, 1, 0], [], []>} : vector<8x32xf32>, vector<16x32xf32>, vector<8x16xf32> -> vector<8x16xf32>
    %6 = vector.broadcast %1 : vector<8x1xf32> to vector<8x16xf32>
    %7 = arith.addf %5, %6 : vector<8x16xf32>
    %8 = arith.negf %7 : vector<8x16xf32>
    %9 = math.exp %8 : vector<8x16xf32>
    %cst_9 = arith.constant 1.000000e+00 : f32
    %10 = vector.broadcast %cst_9 : f32 to vector<8x16xf32>
    %11 = arith.addf %10, %9 : vector<8x16xf32>
    %12 = arith.divf %10, %11 : vector<8x16xf32>
    %13 = vector.broadcast %2 : vector<8x1xf32> to vector<8x16xf32>
    %14 = arith.mulf %12, %13 : vector<8x16xf32>
    %cst_10 = arith.constant dense<0.000000e+00> : vector<16xf32>
    %15 = vector.multi_reduction <add>, %14, %cst_10 [0] : vector<8x16xf32> to vector<16xf32>
    %16 = vector.shape_cast %15 : vector<16xf32> to vector<1x16xf32>
    %17 = vector.broadcast %3 : f32 to vector<1x16xf32>
    %18 = arith.addf %16, %17 : vector<1x16xf32>
    %19 = arith.negf %18 : vector<1x16xf32>
    %20 = math.exp %19 : vector<1x16xf32>
    %cst_11 = arith.constant 1.000000e+00 : f32
    %21 = vector.broadcast %cst_11 : f32 to vector<1x16xf32>
    %22 = arith.addf %21, %20 : vector<1x16xf32>
    %23 = arith.divf %21, %22 : vector<1x16xf32>
    %cst_12 = arith.constant 6.500000e-01 : f32
    %24 = vector.broadcast %cst_12 : f32 to vector<1x16xf32>
    %25 = arith.mulf %24, %23 : vector<1x16xf32>
    %cst_13 = arith.constant 5.000000e-02 : f32
    %26 = vector.broadcast %cst_13 : f32 to vector<1x16xf32>
    %27 = arith.addf %25, %26 : vector<1x16xf32>
    %c0_14 = arith.constant 0 : index
    %c0_15 = arith.constant 0 : index
    %28 = vector.load %arg2[%c0_14, %c0_15] : memref<16x32xf32, #tpu.memory_space<vmem>>, vector<16x32xf32>
    %cst_16 = arith.constant dense<0.000000e+00> : vector<8x16xf32>
    %29 = tpu.matmul %0, %28, %cst_16 {dimension_numbers = #tpu.dot_dimension_numbers<[1], [1], [0], [0], [0, 0, 1, 0], [], []>} : vector<8x32xf32>, vector<16x32xf32>, vector<8x16xf32> -> vector<8x16xf32>
    %30 = vector.broadcast %1 : vector<8x1xf32> to vector<8x16xf32>
    %31 = arith.addf %29, %30 : vector<8x16xf32>
    %32 = arith.negf %31 : vector<8x16xf32>
    %33 = math.exp %32 : vector<8x16xf32>
    %cst_17 = arith.constant 1.000000e+00 : f32
    %34 = vector.broadcast %cst_17 : f32 to vector<8x16xf32>
    %35 = arith.addf %34, %33 : vector<8x16xf32>
    %36 = arith.divf %34, %35 : vector<8x16xf32>
    %37 = vector.broadcast %2 : vector<8x1xf32> to vector<8x16xf32>
    %38 = arith.mulf %36, %37 : vector<8x16xf32>
    %cst_18 = arith.constant dense<0.000000e+00> : vector<16xf32>
    %39 = vector.multi_reduction <add>, %38, %cst_18 [0] : vector<8x16xf32> to vector<16xf32>
    %40 = vector.shape_cast %39 : vector<16xf32> to vector<1x16xf32>
    %41 = vector.broadcast %3 : f32 to vector<1x16xf32>
    %42 = arith.addf %40, %41 : vector<1x16xf32>
    %43 = arith.negf %42 : vector<1x16xf32>
    %44 = math.exp %43 : vector<1x16xf32>
    %cst_19 = arith.constant 1.000000e+00 : f32
    %45 = vector.broadcast %cst_19 : f32 to vector<1x16xf32>
    %46 = arith.addf %45, %44 : vector<1x16xf32>
    %47 = arith.divf %45, %46 : vector<1x16xf32>
    %cst_20 = arith.constant 6.500000e-01 : f32
    %48 = vector.broadcast %cst_20 : f32 to vector<1x16xf32>
    %49 = arith.mulf %48, %47 : vector<1x16xf32>
    %cst_21 = arith.constant 5.000000e-02 : f32
    %50 = vector.broadcast %cst_21 : f32 to vector<1x16xf32>
    %51 = arith.addf %49, %50 : vector<1x16xf32>
    %52 = arith.addf %27, %51 : vector<1x16xf32>
    %cst_22 = arith.constant 5.000000e-01 : f32
    %53 = vector.broadcast %cst_22 : f32 to vector<1x16xf32>
    %54 = arith.mulf %53, %52 : vector<1x16xf32>
    %c0_23 = arith.constant 0 : index
    %c0_24 = arith.constant 0 : index
    %55 = vector.load %arg7[%c0_23, %c0_24] : memref<1x16xf32, #tpu.memory_space<vmem>>, vector<1x16xf32>
    tpu.vector_store %arg7[%c0_23, %c0_24], %54 {strides = array<i32>} : memref<1x16xf32, #tpu.memory_space<vmem>>, vector<1x16xf32>,
    return
  }
  func.func @transform_0(%arg0: i32) -> (i32, i32) {
    %c0_i32 = arith.constant 0 : i32
    %c0_i32_0 = arith.constant 0 : i32
    return %arg0, %c0_i32 : i32, i32
  }
  func.func @transform_1(%arg0: i32) -> (i32, i32) {
    %c0_i32 = arith.constant 0 : i32
    %c0_i32_0 = arith.constant 0 : i32
    return %arg0, %c0_i32 : i32, i32
  }
  func.func @transform_2(%arg0: i32) -> (i32, i32) {
    %c0_i32 = arith.constant 0 : i32
    %c0_i32_0 = arith.constant 0 : i32
    %c0_i32_1 = arith.constant 0 : i32
    return %c0_i32, %c0_i32_0 : i32, i32
  }
  func.func @transform_3(%arg0: i32) -> (i32, i32) {
    %c0_i32 = arith.constant 0 : i32
    %c0_i32_0 = arith.constant 0 : i32
    %c0_i32_1 = arith.constant 0 : i32
    return %c0_i32, %c0_i32_0 : i32, i32
  }
  func.func @transform_4(%arg0: i32) -> (i32, i32) {
    %c0_i32 = arith.constant 0 : i32
    %c0_i32_0 = arith.constant 0 : i32
    %c0_i32_1 = arith.constant 0 : i32
    return %c0_i32, %c0_i32_0 : i32, i32
  }
  func.func @transform_5(%arg0: i32) -> (i32, i32) {
    %c0_i32 = arith.constant 0 : i32
    %c0_i32_0 = arith.constant 0 : i32
    %c0_i32_1 = arith.constant 0 : i32
    return %c0_i32, %c0_i32_0 : i32, i32
  }
  func.func @transform_6(%arg0: i32) -> (i32, i32) {
    %c0_i32 = arith.constant 0 : i32
    %c0_i32_0 = arith.constant 0 : i32
    return %c0_i32, %arg0 : i32, i32
  }
}

</mosaic_0001>

<llo_original>
// kernel: tpu_custom_call.1
$region0: #{tpu_custom_call.1}
  #allocation0 [shape = 'u32[]', space=smem, size = 0x4, offset = 0x4, fixed_abs, tag = 'smem constant byte address 0x4 - core index']
  #allocation1 [shape = 'u32[144,128]{1,0:T(1,128)}', space=vmem, size = 0x12000, scoped, tag = 'internal scratch']
  #allocation2 [shape = 'f32[1,1]{1,0:T(1,128)S(6)}', space=smem, size = 0x200, scoped, tag = 'scoped memory for tpu_custom_call.1']
  %s0 = inlined_call_operand.vmem [shape: f32[16,32], index: 0, kind: input, shape index: {}]
  %s1 = inlined_call_operand.hbm [shape: f32[16,32], index: 1, kind: input, shape index: {}]
  %s2 = inlined_call_operand.hbm [shape: f32[8,32], index: 2, kind: input, shape index: {}]
  %s3 = inlined_call_operand.vmem [shape: f32[8,1], index: 3, kind: input, shape index: {}]
  %s4 = inlined_call_operand.vmem [shape: f32[8,1], index: 4, kind: input, shape index: {}]
  %s5 = inlined_call_operand.<no memory space> [shape: f32[1,1], index: 5, kind: input, shape index: {}]
  %s6 = inlined_call_operand.hbm [shape: f32[1,16], index: 6, kind: output, shape index: {}]
  %s7 = sld [smem:[#allocation0]]
  $region42: #{tpu_custom_call.1} parent=0
    _
  %s9 = ssub.s32 1, %s7
  %s10 = scalar_select 0, %s9, %s7
  %11 = sst [smem:[#allocation2]] %s5
  $region1: #{tpu_custom_call.1} parent=0
    #allocation3 [shape = 'u8[8192]{0}', space=vmem, size = 0x2000, scoped, tag = 'input window, operand 1, single buffered']
    #allocation4 [shape = 's32[1]{0}', space=sflag, size = 0x4, scoped, tag = 'scoped memory for tpu_custom_call.1']
    #allocation5 [shape = 's32[1]{0}', space=sflag, size = 0x4, scoped, tag = 'scoped memory for tpu_custom_call.1']
    #allocation6 [shape = 'u8[4096]{0}', space=vmem, size = 0x1000, scoped, tag = 'input window, operand 2, single buffered']
    #allocation7 [shape = 's32[1]{0}', space=sflag, size = 0x4, scoped, tag = 'scoped memory for tpu_custom_call.1']
    #allocation8 [shape = 'u8[512]{0}', space=vmem, size = 0x400, scoped, tag = 'output window, operand 0, single buffered']
    %12 = vsyncpa [#allocation4], 0
    %13 = vsyncpa [#allocation7], 0
    %14 = vsyncpa [#allocation5], 0
    // Predicated region
    $region2: #{tpu_custom_call.1} parent=1 // pred_check
      _
    $region3: #{tpu_custom_call.1} parent=1 // pred_check_branch
      %16 = sbr.rel (0) target = $region5
    $region4: #{tpu_custom_call.1} parent=1 // pred_region
      _
    $region5: #{tpu_custom_call.1} parent=1 // pred_fallthru
      _
    // Predicated region
    $region6: #{tpu_custom_call.1} parent=1 // pred_check
      _
    $region7: #{tpu_custom_call.1} parent=1 // pred_check_branch
      %18 = sbr.rel (0) target = $region9
    $region8: #{tpu_custom_call.1} parent=1 // pred_region
      %s20 = ssub.s32 256, 256
      %21 = vsyncadd [#allocation4], %s20
      %s22 = sshll.u32 [#allocation3], 4
      %s23 = int_to_ptr.vmem [resolvable:$true] %s22
      %28 = dma.hbm_to_vmem [thread:$0]  %s1, 256, %s23, [#allocation4], 128, 128, 8
    $region9: #{tpu_custom_call.1} parent=1 // pred_fallthru
      _
    // Predicated region
    $region10: #{tpu_custom_call.1} parent=1 // pred_check
      _
    $region11: #{tpu_custom_call.1} parent=1 // pred_check_branch
      %30 = sbr.rel (0) target = $region13
    $region12: #{tpu_custom_call.1} parent=1 // pred_region
      %s32 = ssub.s32 128, 128
      %33 = vsyncadd [#allocation7], %s32
      %s35 = sshll.u32 [#allocation6], 4
      %s36 = int_to_ptr.vmem [resolvable:$true] %s35
      %38 = dma.hbm_to_vmem [thread:$0]  %s2, 128, %s36, [#allocation7]
    $region13: #{tpu_custom_call.1} parent=1 // pred_fallthru
      _
    // Predicated region
    $region14: #{tpu_custom_call.1} parent=1 // pred_check
      _
    $region15: #{tpu_custom_call.1} parent=1 // pred_check_branch
      %40 = sbr.rel (0) target = $region17
    $region16: #{tpu_custom_call.1} parent=1 // pred_region
      _
    $region17: #{tpu_custom_call.1} parent=1 // pred_fallthru
      _
    // Predicated region
    $region18: #{tpu_custom_call.1} parent=1 // pred_check
      _
    $region19: #{tpu_custom_call.1} parent=1 // pred_check_branch
      %42 = sbr.rel (0) target = $region21
    $region20: #{tpu_custom_call.1} parent=1 // pred_region
      _
    $region21: #{tpu_custom_call.1} parent=1 // pred_fallthru
      _
    // Predicated region
    $region22: #{tpu_custom_call.1} parent=1 // pred_check
      _
    $region23: #{tpu_custom_call.1} parent=1 // pred_check_branch
      %44 = sbr.rel (0) target = $region25
    $region24: #{tpu_custom_call.1} parent=1 // pred_region
      _
    $region25: #{tpu_custom_call.1} parent=1 // pred_fallthru
      _
    // Predicated region
    $region26: #{tpu_custom_call.1} parent=1 // pred_check
      _
    $region27: #{tpu_custom_call.1} parent=1 // pred_check_branch
      %46 = sbr.rel (0) target = $region29
    $region28: #{tpu_custom_call.1} parent=1 // pred_region
      %47 = dma.done [#allocation4], 256
    $region29: #{tpu_custom_call.1} parent=1 // pred_fallthru
      _
    // Predicated region
    $region30: #{tpu_custom_call.1} parent=1 // pred_check
      _
    $region31: #{tpu_custom_call.1} parent=1 // pred_check_branch
      %49 = sbr.rel (0) target = $region33
    $region32: #{tpu_custom_call.1} parent=1 // pred_region
      %50 = dma.done [#allocation7], 128
    $region33: #{tpu_custom_call.1} parent=1 // pred_fallthru
      _
    %v51 = vld [vmem:[#allocation6] sm:$0xff]
    %v52 = vld [vmem:[%s3] sm:$0xff]
    %v53 = vld [vmem:[%s4] sm:$0xff]
    %s54 = sld [smem:[#allocation2]]
    %v55 = vld [vmem:[%s0] sm:$0xff]
    %v56 = vld [vmem:[%s0 + $0x8] sm:$0xff]
    %58 = vset.pattern.permute.xlu0 0
    %59 = vperm.xlu0 %58, %v52
    %v60 = vpop.permute.xlu0 %59
    %vm62 = vcmask 261120
    %v64 = vsel %vm62, %v51, 0
    %v67 = vsel %vm62, %v55, 0
    %v70 = vsel %vm62, %v56, 0
    %72 = vmatprep.subr.mxu0 0.0
    %73 = vmatpush1.xpose.msra.mxu0 0.0
    %74 = vmatprep.subr.mxu0 0.0
    %75 = vmatpush1.xpose.msra.mxu0 0.0
    %76 = vmatprep.subr.mxu0 0.0
    %77 = vmatpush1.xpose.msra.mxu0 0.0
    %78 = vmatprep.subr.mxu0 0.0
    %79 = vmatpush1.xpose.msra.mxu0 0.0
    %80 = vmatprep.subr.mxu0 0.0
    %81 = vmatpush1.xpose.msra.mxu0 0.0
    %82 = vmatprep.subr.mxu0 0.0
    %83 = vmatpush1.xpose.msra.mxu0 0.0
    %84 = vmatprep.subr.mxu0 0.0
    %85 = vmatpush1.xpose.msra.mxu0 0.0
    %86 = vmatprep.subr.mxu0 0.0
    %87 = vmatpush1.xpose.msra.mxu0 0.0
    %88 = vmatprep.subr.mxu0 0.0
    %89 = vmatpush1.xpose.msra.mxu0 0.0
    %90 = vmatprep.subr.mxu0 0.0
    %91 = vmatpush1.xpose.msra.mxu0 0.0
    %92 = vmatprep.subr.mxu0 0.0
    %93 = vmatpush1.xpose.msra.mxu0 0.0
    %94 = vmatprep.subr.mxu0 0.0
    %95 = vmatpush1.xpose.msra.mxu0 0.0
    %96 = vmatprep.subr.mxu0 0.0
    %97 = vmatpush1.xpose.msra.mxu0 0.0
    %98 = vmatprep.subr.mxu0 0.0
    %99 = vmatpush1.xpose.msra.mxu0 0.0
    %100 = vmatprep.subr.mxu0 0.0
    %101 = vmatpush1.xpose.msra.mxu0 %v70
    %102 = vmatprep.subr.mxu0 0.0
    %103 = vmatpush1.xpose.msra.mxu0 %v67
    %104 = vmatprep.subr.mxu0 0.0
    %105 = vmatpush2.xpose.msra.mxu0 0.0
    %106 = vmatprep.subr.mxu0 0.0
    %107 = vmatpush2.xpose.msra.mxu0 0.0
    %108 = vmatprep.subr.mxu0 0.0
    %109 = vmatpush2.xpose.msra.mxu0 0.0
    %110 = vmatprep.subr.mxu0 0.0
    %111 = vmatpush2.xpose.msra.mxu0 0.0
    %112 = vmatprep.subr.mxu0 0.0
    %113 = vmatpush2.xpose.msra.mxu0 0.0
    %114 = vmatprep.subr.mxu0 0.0
    %115 = vmatpush2.xpose.msra.mxu0 0.0
    %116 = vmatprep.subr.mxu0 0.0
    %117 = vmatpush2.xpose.msra.mxu0 0.0
    %118 = vmatprep.subr.mxu0 0.0
    %119 = vmatpush2.xpose.msra.mxu0 0.0
    %120 = vmatprep.subr.mxu0 0.0
    %121 = vmatpush2.xpose.msra.mxu0 0.0
    %122 = vmatprep.subr.mxu0 0.0
    %123 = vmatpush2.xpose.msra.mxu0 0.0
    %124 = vmatprep.subr.mxu0 0.0
    %125 = vmatpush2.xpose.msra.mxu0 0.0
    %126 = vmatprep.subr.mxu0 0.0
    %127 = vmatpush2.xpose.msra.mxu0 0.0
    %128 = vmatprep.subr.mxu0 0.0
    %129 = vmatpush2.xpose.msra.mxu0 0.0
    %130 = vmatprep.subr.mxu0 0.0
    %131 = vmatpush2.xpose.msra.mxu0 0.0
    %132 = vmatprep.subr.mxu0 0.0
    %133 = vmatpush2.xpose.msra.mxu0 0.0
    %134 = vmatprep.subr.mxu0 0.0
    %135 = vmatpush2.xpose.msra.mxu0 0.0
    %136 = vmatprep.mubr.f32.mxu0 0.0
    %137 = vmatmul.mubr.f32.gmra.mxu0 %v64
    %v138 = vpop.f32.mrf.mxu0
    %v139 = vadd.f32 %v60, %v138
    %v140 = vpop.f32.mrf.mxu0
    %141 = vdwg.mxu0
    %v142 = vxor.u32 %v139, 2147483648
    %v143 = vmul.f32 %v142, 1.442695
    %v144 = vpow.pop %v143
    %v145 = vadd.f32 %v144, 1.0
    %v146 = vrcp.pop %v145
    %v147 = vmul.f32 1.0, %v146
    %149 = vset.pattern.permute.xlu0 0
    %150 = vperm.xlu0 %149, %v53
    %v151 = vpop.permute.xlu0 %150
    %v153 = vmul.f32 %v147, %v151
    %vm154 = vcmask 130048
    %v155 = vsel %vm154, %v153, 0.0
    %v156 = vrot.slane %v155, 4
    %v157 = vadd.f32 %v155, %v156
    %v158 = vrot.slane %v157, 2
    %v159 = vadd.f32 %v157, %v158
    %v160 = vrot.slane %v159, 1
    %v161 = vadd.f32 %v159, %v160
    %v162 = vstv %s54
    %v163 = vadd.f32 %v161, %v162
    %v164 = vxor.u32 %v163, 2147483648
    %v165 = vmul.f32 %v164, 1.442695
    %v166 = vpow.pop %v165
    %v167 = vadd.f32 %v166, 1.0
    %v168 = vrcp.pop %v167
    %v169 = vmul.f32 1.0, %v168
    %v170 = vmul.f32 %v169, 0.65
    %v171 = vadd.f32 %v170, 0.05
    %v172 = vld [vmem:[#allocation3] sm:$0xff]
    %v173 = vld [vmem:[#allocation3 + $0x8] sm:$0xff]
    %v175 = vsel %vm62, %v172, 0
    %v178 = vsel %vm62, %v173, 0
    %180 = vmatprep.subr.mxu0 0.0
    %181 = vmatpush1.xpose.msra.mxu0 0.0
    %182 = vmatprep.subr.mxu0 0.0
    %183 = vmatpush1.xpose.msra.mxu0 0.0
    %184 = vmatprep.subr.mxu0 0.0
    %185 = vmatpush1.xpose.msra.mxu0 0.0
    %186 = vmatprep.subr.mxu0 0.0
    %187 = vmatpush1.xpose.msra.mxu0 0.0
    %188 = vmatprep.subr.mxu0 0.0
    %189 = vmatpush1.xpose.msra.mxu0 0.0
    %190 = vmatprep.subr.mxu0 0.0
    %191 = vmatpush1.xpose.msra.mxu0 0.0
    %192 = vmatprep.subr.mxu0 0.0
    %193 = vmatpush1.xpose.msra.mxu0 0.0
    %194 = vmatprep.subr.mxu0 0.0
    %195 = vmatpush1.xpose.msra.mxu0 0.0
    %196 = vmatprep.subr.mxu0 0.0
    %197 = vmatpush1.xpose.msra.mxu0 0.0
    %198 = vmatprep.subr.mxu0 0.0
    %199 = vmatpush1.xpose.msra.mxu0 0.0
    %200 = vmatprep.subr.mxu0 0.0
    %201 = vmatpush1.xpose.msra.mxu0 0.0
    %202 = vmatprep.subr.mxu0 0.0
    %203 = vmatpush1.xpose.msra.mxu0 0.0
    %204 = vmatprep.subr.mxu0 0.0
    %205 = vmatpush1.xpose.msra.mxu0 0.0
    %206 = vmatprep.subr.mxu0 0.0
    %207 = vmatpush1.xpose.msra.mxu0 0.0
    %208 = vmatprep.subr.mxu0 0.0
    %209 = vmatpush1.xpose.msra.mxu0 %v178
    %210 = vmatprep.subr.mxu0 0.0
    %211 = vmatpush1.xpose.msra.mxu0 %v175
    %212 = vmatprep.subr.mxu0 0.0
    %213 = vmatpush2.xpose.msra.mxu0 0.0
    %214 = vmatprep.subr.mxu0 0.0
    %215 = vmatpush2.xpose.msra.mxu0 0.0
    %216 = vmatprep.subr.mxu0 0.0
    %217 = vmatpush2.xpose.msra.mxu0 0.0
    %218 = vmatprep.subr.mxu0 0.0
    %219 = vmatpush2.xpose.msra.mxu0 0.0
    %220 = vmatprep.subr.mxu0 0.0
    %221 = vmatpush2.xpose.msra.mxu0 0.0
    %222 = vmatprep.subr.mxu0 0.0
    %223 = vmatpush2.xpose.msra.mxu0 0.0
    %224 = vmatprep.subr.mxu0 0.0
    %225 = vmatpush2.xpose.msra.mxu0 0.0
    %226 = vmatprep.subr.mxu0 0.0
    %227 = vmatpush2.xpose.msra.mxu0 0.0
    %228 = vmatprep.subr.mxu0 0.0
    %229 = vmatpush2.xpose.msra.mxu0 0.0
    %230 = vmatprep.subr.mxu0 0.0
    %231 = vmatpush2.xpose.msra.mxu0 0.0
    %232 = vmatprep.subr.mxu0 0.0
    %233 = vmatpush2.xpose.msra.mxu0 0.0
    %234 = vmatprep.subr.mxu0 0.0
    %235 = vmatpush2.xpose.msra.mxu0 0.0
    %236 = vmatprep.subr.mxu0 0.0
    %237 = vmatpush2.xpose.msra.mxu0 0.0
    %238 = vmatprep.subr.mxu0 0.0
    %239 = vmatpush2.xpose.msra.mxu0 0.0
    %240 = vmatprep.subr.mxu0 0.0
    %241 = vmatpush2.xpose.msra.mxu0 0.0
    %242 = vmatprep.subr.mxu0 0.0
    %243 = vmatpush2.xpose.msra.mxu0 0.0
    %244 = vmatprep.mubr.f32.mxu0 0.0
    %245 = vmatmul.mubr.f32.gmra.mxu0 %v64
    %v246 = vpop.f32.mrf.mxu0
    %v247 = vadd.f32 %v60, %v246
    %v248 = vpop.f32.mrf.mxu0
    %249 = vdwg.mxu0
    %v250 = vxor.u32 %v247, 2147483648
    %v251 = vmul.f32 %v250, 1.442695
    %v252 = vpow.pop %v251
    %v253 = vadd.f32 %v252, 1.0
    %v254 = vrcp.pop %v253
    %v255 = vmul.f32 1.0, %v254
    %v256 = vmul.f32 %v255, %v151
    %v257 = vsel %vm154, %v256, 0.0
    %v258 = vrot.slane %v257, 4
    %v259 = vadd.f32 %v257, %v258
    %v260 = vrot.slane %v259, 2
    %v261 = vadd.f32 %v259, %v260
    %v262 = vrot.slane %v261, 1
    %v263 = vadd.f32 %v261, %v262
    %v264 = vadd.f32 %v263, %v162
    %v265 = vxor.u32 %v264, 2147483648
    %v266 = vmul.f32 %v265, 1.442695
    %v267 = vpow.pop %v266
    %v268 = vadd.f32 %v267, 1.0
    %v269 = vrcp.pop %v268
    %v270 = vmul.f32 1.0, %v269
    %v271 = vmul.f32 %v270, 0.65
    %v272 = vadd.f32 %v271, 0.05
    %v273 = vadd.f32 %v171, %v272
    %v274 = vmul.f32 %v273, 0.5
    %vm275 = vcmask 122880
    %276 = vst.msk [vmem:[#allocation8] sm:$0x1] %vm275, %v274
    // Predicated region
    $region34: #{tpu_custom_call.1} parent=1 // pred_check
      _
    $region35: #{tpu_custom_call.1} parent=1 // pred_check_branch
      %278 = sbr.rel (0) target = $region37
    $region36: #{tpu_custom_call.1} parent=1 // pred_region
      %s280 = ssub.s32 16, 16
      %281 = vsyncadd [#allocation5], %s280
      %s283 = sshll.u32 [#allocation8], 4
      %s284 = int_to_ptr.vmem [resolvable:$true] %s283
      %286 = dma.vmem_to_hbm [thread:$0]  %s284, 16, %s6, [#allocation5]
    $region37: #{tpu_custom_call.1} parent=1 // pred_fallthru
      _
    // Predicated region
    $region38: #{tpu_custom_call.1} parent=1 // pred_check
      _
    $region39: #{tpu_custom_call.1} parent=1 // pred_check_branch
      %288 = sbr.rel (0) target = $region41
    $region40: #{tpu_custom_call.1} parent=1 // pred_region
      %289 = dma.done [#allocation5], 16
    $region41: #{tpu_custom_call.1} parent=1 // pred_fallthru
      _
    %290 = vsyncpa [#allocation4], 1
    %291 = vsyncpa [#allocation7], 1
    %292 = vsyncpa [#allocation5], 1

</llo_original>
